<compile_context>
chip_gen: v6e
topology: v6e:2x2x1
jax: 0.10.0
libtpu: 0.0.40
codegen_flags: <defaults>
</compile_context>

<pallas_src>
import functools

import numpy as np

import jax
import jax.numpy as jnp
from jax import lax
from jax.experimental import pallas as pl
from jax.experimental.pallas import tpu as pltpu

_LANE = 128
_SUBLANE = 8
_VREG = _LANE * _SUBLANE                       # 1024 elements
_TARGET_INPUT_VMEM = 16 * 1024 * 1024          # double-buffered input streams budget
_VMEM_LIMIT = 32 * 1024 * 1024                 # <= physical VMEM on v5e/v6e/v7x


def _make_kernel(weighted, rows, tile_rows):
    """Build the XTanh partial-sum kernel for a (rows, 128) slab, tile_rows per step."""
    valid_last = rows % tile_rows              # static; 0 => every block is full

    def _tile_sum(e):
        f = e * jnp.tanh(e)
        return f.reshape(-1, _SUBLANE, _LANE).sum(axis=0)

    def kernel(*refs):
        if weighted:
            y_ref, yp_ref, w_ref, o_ref = refs
        else:
            y_ref, yp_ref, o_ref = refs
        j = pl.program_id(0)

        @pl.when(j == 0)
        def _():
            o_ref[...] = jnp.zeros_like(o_ref)

        e = y_ref[...].astype(jnp.float32) - yp_ref[...].astype(jnp.float32)
        if weighted:
            e = e * w_ref[...].astype(jnp.float32)

        if valid_last == 0:
            o_ref[...] += _tile_sum(e)
        else:
            last = pl.num_programs(0) - 1

            @pl.when(j != last)
            def _():
                o_ref[...] += _tile_sum(e)

            @pl.when(j == last)
            def _():
                # Only the last block is partial; mask the garbage rows.
                row_id = lax.broadcasted_iota(jnp.int32, e.shape, 0)
                o_ref[...] += _tile_sum(jnp.where(row_id < valid_last, e, 0.0))

    return kernel


def _flatten_to(x, bshape):
    x = jnp.asarray(x)
    if x.shape != bshape:
        # TODO(synk): keep small broadcast weights resident (SMEM/untiled VMEM)
        # and broadcast on the VPU in-kernel instead of materializing a slab.
        x = jnp.broadcast_to(x, bshape)
    return x.reshape(-1)


@functools.partial(jax.jit, static_argnames=("reduction", "block_rows"))
def xtanh_loss(y_t, y_prime_t, weights=None, reduction=None, block_rows=None):
    """JAX/Pallas equivalent of XTanhLoss(reduction).forward(y_t, y_prime_t, weights)."""
    shapes = [jnp.shape(y_t), jnp.shape(y_prime_t)]
    if weights is not None:
        shapes.append(jnp.shape(weights))
    bshape = jnp.broadcast_shapes(*shapes)
    n = int(np.prod(bshape, dtype=np.int64))

    if n == 0:
        # torch.sum of empty tensor == 0; torch.mean of empty tensor == nan
        return jnp.float32(0.0) if reduction == "sum" else jnp.float32(jnp.nan)

    streams = [_flatten_to(y_t, bshape), _flatten_to(y_prime_t, bshape)]
    if weights is not None:
        streams.append(_flatten_to(weights, bshape))

    # Lane/sublane aligned (rows, 128) slabs.  When n % 1024 == 0 the reshape
    # is a free bitcast (no extra HBM traffic).  Otherwise fall back to a
    # single zero pad (f(0) = 0, so the padding contributes nothing).
    if n % _VREG == 0:
        padded_n = n
    else:
        padded_n = pl.cdiv(n, _VREG) * _VREG
        streams = [jnp.pad(s, (0, padded_n - n)) for s in streams]
    rows = padded_n // _LANE                   # always a multiple of 8

    # Biggest lane-dense tile whose double-buffered input working set stays
    # inside the VMEM budget (8192 rows f32 unweighted, ~5456 rows weighted).
    bytes_per_row = _LANE * sum(s.dtype.itemsize for s in streams)
    max_tile_rows = (_TARGET_INPUT_VMEM // (2 * bytes_per_row)) // _SUBLANE * _SUBLANE
    max_tile_rows = max(_SUBLANE, max_tile_rows)
    if block_rows is not None:                 # test/tuning override
        max_tile_rows = block_rows
    tile_rows = rows if rows <= max_tile_rows else max_tile_rows
    num_blocks = pl.cdiv(rows, tile_rows)

    slabs = [s.reshape(rows, _LANE) for s in streams]
    in_spec = pl.BlockSpec((tile_rows, _LANE), lambda i: (i, 0))
    out_spec = pl.BlockSpec((_SUBLANE, _LANE), lambda i: (0, 0))

    kernel = _make_kernel(weights is not None, rows, tile_rows)

    # TODO(synk): on v7x (2 TensorCores) shard the block axis across cores via
    # pltpu.CORE_PARALLEL / pl.core_map so both cores stream HBM concurrently.
    partial = pl.pallas_call(
        kernel,
        out_shape=jax.ShapeDtypeStruct((_SUBLANE, _LANE), jnp.float32),
        grid_spec=pltpu.PrefetchScalarGridSpec(
            num_scalar_prefetch=0,
            grid=(num_blocks,),
            in_specs=[in_spec] * len(slabs),
            out_specs=out_spec,
        ),
        compiler_params=pltpu.CompilerParams(
            dimension_semantics=("arbitrary",),
            vmem_limit_bytes=_VMEM_LIMIT,
        ),
    )(*slabs)

    total = jnp.sum(partial)
    if reduction == "sum":
        return total
    return total / jnp.float32(n)


def _reference(y_t, y_prime_t, weights=None, reduction=None):
    e = (y_t.astype(jnp.float32) - y_prime_t.astype(jnp.float32))
    if weights is not None:
        e = e * weights.astype(jnp.float32)
    f = e * jnp.tanh(e)
    return jnp.sum(f) if reduction == "sum" else jnp.mean(f)


if __name__ == "__main__":
    key = jax.random.PRNGKey(0)
    k1, k2, k3, k4, k5 = jax.random.split(key, 5)

    shape = (2, 4, 16, 16)  # NCHW-style regression targets/predictions
    y_t = jax.random.normal(k1, shape, dtype=jnp.float32)
    y_p = jax.random.normal(k2, shape, dtype=jnp.float32)
    w = jax.random.uniform(k3, shape, dtype=jnp.float32)

    ok = True
    for reduction in (None, "sum"):
        for ww in (None, w):
            out = jax.block_until_ready(xtanh_loss(y_t, y_p, ww, reduction=reduction))
            ref = _reference(y_t, y_p, ww, reduction=reduction)
            ok &= bool(jnp.allclose(out, ref, rtol=1e-5, atol=1e-5))

    # Multi-block path with a ragged (masked) last block.
    a = jax.random.normal(k4, (24, 128), dtype=jnp.float32)
    b = jax.random.normal(k5, (24, 128), dtype=jnp.float32)
    out = jax.block_until_ready(xtanh_loss(a, b, reduction="sum", block_rows=16))
    ok &= bool(jnp.allclose(out, _reference(a, b, reduction="sum"), rtol=1e-5, atol=1e-5))

    # Non-vreg-aligned size -> pad fallback path.
    a2, b2 = a[:, :100], b[:, :100]
    out = jax.block_until_ready(xtanh_loss(a2, b2, reduction=None))
    ok &= bool(jnp.allclose(out, _reference(a2, b2, reduction=None), rtol=1e-5, atol=1e-5))

    if ok:
        print("KERNEL_OK")
    else:
        print("KERNEL_MISMATCH")
</pallas_src>

<mosaic_0001>
module attributes {stable_mosaic.version = 11 : i64} {
  func.func @kernel(%arg0: i32, %arg1: memref<16x128xf32, #tpu.memory_space<vmem>>, %arg2: memref<16x128xf32, #tpu.memory_space<vmem>>, %arg3: memref<8x128xf32, #tpu.memory_space<vmem>>) attributes {dimension_semantics = [#tpu.dimension_semantics<arbitrary>], iteration_bounds = array<i64: 1>, scalar_prefetch = 0 : i64, scratch_operands = 0 : i64, tpu.core_type = #tpu.core_type<tc>, window_params = [{transform_indices = @transform_0, window_bounds = array<i64: 16, 128>}, {transform_indices = @transform_1, window_bounds = array<i64: 16, 128>}, {pipeline_mode = #tpu.pipeline_mode<synchronous>, transform_indices = @transform_2, window_bounds = array<i64: 8, 128>}]} {
    %c0_i32 = arith.constant 0 : i32
    %0 = arith.cmpi eq, %arg0, %c0_i32 : i32
    %1 = arith.extui %0 : i1 to i32
    %c0_i32_0 = arith.constant 0 : i32
    %2 = arith.cmpi ne, %1, %c0_i32_0 : i32
    scf.if %2 {
      %cst_8 = arith.constant 0.000000e+00 : f32
      %13 = vector.broadcast %cst_8 : f32 to vector<8x128xf32>
      %c0_9 = arith.constant 0 : index
      %c0_10 = arith.constant 0 : index
      %14 = vector.load %arg3[%c0_9, %c0_10] : memref<8x128xf32, #tpu.memory_space<vmem>>, vector<8x128xf32>
      tpu.vector_store %arg3[%c0_9, %c0_10], %13 {strides = array<i32>} : memref<8x128xf32, #tpu.memory_space<vmem>>, vector<8x128xf32>,
    } else {
    }
    %c0 = arith.constant 0 : index
    %c0_1 = arith.constant 0 : index
    %3 = vector.load %arg1[%c0, %c0_1] : memref<16x128xf32, #tpu.memory_space<vmem>>, vector<16x128xf32>
    %c0_2 = arith.constant 0 : index
    %c0_3 = arith.constant 0 : index
    %4 = vector.load %arg2[%c0_2, %c0_3] : memref<16x128xf32, #tpu.memory_space<vmem>>, vector<16x128xf32>
    %5 = arith.subf %3, %4 : vector<16x128xf32>
    %c0_4 = arith.constant 0 : index
    %c0_5 = arith.constant 0 : index
    %6 = vector.load %arg3[%c0_4, %c0_5] : memref<8x128xf32, #tpu.memory_space<vmem>>, vector<8x128xf32>
    %7 = math.tanh %5 : vector<16x128xf32>
    %8 = arith.mulf %5, %7 : vector<16x128xf32>
    %9 = vector.shape_cast %8 : vector<16x128xf32> to vector<2x8x128xf32>
    %cst = arith.constant dense<0.000000e+00> : vector<8x128xf32>
    %10 = vector.multi_reduction <add>, %9, %cst [0] : vector<2x8x128xf32> to vector<8x128xf32>
    %11 = arith.addf %6, %10 : vector<8x128xf32>
    %c0_6 = arith.constant 0 : index
    %c0_7 = arith.constant 0 : index
    %12 = vector.load %arg3[%c0_6, %c0_7] : memref<8x128xf32, #tpu.memory_space<vmem>>, vector<8x128xf32>
    tpu.vector_store %arg3[%c0_6, %c0_7], %11 {strides = array<i32>} : memref<8x128xf32, #tpu.memory_space<vmem>>, vector<8x128xf32>,
    return
  }
  func.func @transform_0(%arg0: i32) -> (i32, i32) {
    %c0_i32 = arith.constant 0 : i32
    %c0_i32_0 = arith.constant 0 : i32
    return %arg0, %c0_i32 : i32, i32
  }
  func.func @transform_1(%arg0: i32) -> (i32, i32) {
    %c0_i32 = arith.constant 0 : i32
    %c0_i32_0 = arith.constant 0 : i32
    return %arg0, %c0_i32 : i32, i32
  }
  func.func @transform_2(%arg0: i32) -> (i32, i32) {
    %c0_i32 = arith.constant 0 : i32
    %c0_i32_0 = arith.constant 0 : i32
    %c0_i32_1 = arith.constant 0 : i32
    return %c0_i32, %c0_i32_0 : i32, i32
  }
}

</mosaic_0001>

<llo_original>
// kernel: xtanh_loss.1
$region0: #{xtanh_loss.1}
  #allocation0 [shape = 'u32[]', space=smem, size = 0x4, offset = 0x4, fixed_abs, tag = 'smem constant byte address 0x4 - core index']
  #allocation1 [shape = 'u32[144,128]{1,0:T(1,128)}', space=vmem, size = 0x12000, scoped, tag = 'internal scratch']
  %s0 = inlined_call_operand.vmem [shape: f32[16,128], index: 0, kind: input, shape index: {}]
  %s1 = inlined_call_operand.vmem [shape: f32[16,128], index: 1, kind: input, shape index: {}]
  %s2 = inlined_call_operand.vmem [shape: f32[8,128], index: 2, kind: output, shape index: {}]
  %s3 = sld [smem:[#allocation0]]
  $region22: #{xtanh_loss.1} parent=0
    _
  %s5 = ssub.s32 1, %s3
  %s6 = scalar_select 0, %s5, %s3
  // Predicated region
  $region2: #{xtanh_loss.1} parent=0 // pred_check
    _
  $region3: #{xtanh_loss.1} parent=0 // pred_check_branch
    %8 = sbr.rel (0) target = $region5
  $region4: #{xtanh_loss.1} parent=0 // pred_region
    _
  $region5: #{xtanh_loss.1} parent=0 // pred_fallthru
    _
  // Predicated region
  $region6: #{xtanh_loss.1} parent=0 // pred_check
    _
  $region7: #{xtanh_loss.1} parent=0 // pred_check_branch
    %10 = sbr.rel (0) target = $region9
  $region8: #{xtanh_loss.1} parent=0 // pred_region
    _
  $region9: #{xtanh_loss.1} parent=0 // pred_fallthru
    _
  %p11 = scmp.eq.s32.totalorder 0, 0
  // Predicated region
  $region10: #{xtanh_loss.1} parent=0 // pred_check
    %p12 = pneg %p11
  $region11: #{xtanh_loss.1} parent=0 // pred_check_branch
    %14 = sbr.rel (%p12) target = $region13
  $region12: #{xtanh_loss.1} parent=0 // pred_region
    %15 = vst [vmem:[%s2] sm:$0xff] 0.0
  $region13: #{xtanh_loss.1} parent=0 // pred_fallthru
    _
  %v16 = vld [vmem:[%s0] sm:$0xff]
  %v17 = vld [vmem:[%s0 + $0x8] sm:$0xff]
  %v18 = vld [vmem:[%s1] sm:$0xff]
  %v19 = vld [vmem:[%s1 + $0x8] sm:$0xff]
  %v20 = vsub.f32 %v16, %v18
  %v21 = vsub.f32 %v17, %v19
  %v22 = vld [vmem:[%s2] sm:$0xff]
  %v23 = vtanh.pop %v20
  %v24 = vtanh.pop %v21
  %v25 = vmul.f32 %v20, %v23
  %v26 = vmul.f32 %v21, %v24
  %v27 = vadd.f32 %v25, %v26
  %v28 = vadd.f32 %v22, %v27
  %29 = vst [vmem:[%s2] sm:$0xff] %v28
  // Predicated region
  $region14: #{xtanh_loss.1} parent=0 // pred_check
    _
  $region15: #{xtanh_loss.1} parent=0 // pred_check_branch
    %31 = sbr.rel (0) target = $region17
  $region16: #{xtanh_loss.1} parent=0 // pred_region
    _
  $region17: #{xtanh_loss.1} parent=0 // pred_fallthru
    _
  // Predicated region
  $region18: #{xtanh_loss.1} parent=0 // pred_check
    _
  $region19: #{xtanh_loss.1} parent=0 // pred_check_branch
    %33 = sbr.rel (0) target = $region21
  $region20: #{xtanh_loss.1} parent=0 // pred_region
    _
  $region21: #{xtanh_loss.1} parent=0 // pred_fallthru
    _

</llo_original>
